<compile_context>
chip_gen: v7x
topology: tpu7x:2x2x1
jax: 0.10.0
libtpu: 0.0.40
codegen_flags: <defaults>
</compile_context>

<pallas_src>
import functools
import math

import jax
import jax.numpy as jnp
from jax.experimental import pallas as pl
from jax.experimental.pallas import tpu as pltpu


def _erf(x):
    # float32-accurate erf (Abramowitz & Stegun 7.1.26, max abs err ~1.5e-7),
    # reproducing torch.nn.functional.gelu(approximate='none') well inside the
    # 1e-5 parity bar.  The exp lands on the EUP slot; the division is kept
    # exact (approx reciprocal would risk the 1e-5 tolerance).
    # TODO(synk): swap to jax.lax.erf if/when Mosaic guarantees an EUP lowering.
    a1, a2, a3, a4, a5 = 0.254829592, -0.284496736, 1.421413741, -1.453152027, 1.061405429
    p = 0.3275911
    ax = jnp.abs(x)
    t = 1.0 / (1.0 + p * ax)
    poly = ((((a5 * t + a4) * t + a3) * t + a2) * t + a1) * t
    r = 1.0 - poly * jnp.exp(-ax * ax)
    return jnp.where(x < 0.0, -r, r)


def _gelu_exact(x):
    # torch.nn.functional.gelu default (approximate='none').
    return 0.5 * x * (1.0 + _erf(x * (1.0 / math.sqrt(2.0))))


def _fan_kernel(xt_ref, w1t_ref, b1t_ref, wct_ref, wst_ref, wgt_ref, bot_ref,
                ot_ref, *, p_dim):
    xt = xt_ref[...]                                             # [d_in, T]
    # Fused first stage: one MXU matmul covers the p- and g-branch Linears.
    y = jnp.dot(w1t_ref[...], xt, preferred_element_type=jnp.float32) + b1t_ref[...]
    p = y[:p_dim, :]                # sublane-aligned slice (p_dim % 8 == 0)
    g = _gelu_exact(y[p_dim:, :])   # sublane-aligned slice, lane-dense vregs
    # Output Linear without the concat: weight rows split by [cos(p)|sin(p)|g].
    o = jnp.dot(wct_ref[...], jnp.cos(p), preferred_element_type=jnp.float32)
    o = o + jnp.dot(wst_ref[...], jnp.sin(p), preferred_element_type=jnp.float32)
    o = o + jnp.dot(wgt_ref[...], g, preferred_element_type=jnp.float32)
    ot_ref[...] = (o + bot_ref[...]).astype(ot_ref.dtype)


def fan_forecast(x, params, *, col_tile=None):
    """x: [N, d_in]; params = (wp, bp, wg, bg, wo, bo) in [in, out] layout."""
    N, d_in = x.shape
    wp, bp, wg, bg, wo, bo = params
    p_dim = wp.shape[1]
    g_dim = wg.shape[1]
    fan_units, out_dim = wo.shape
    assert fan_units == 2 * p_dim + g_dim

    f32 = jnp.float32
    # --- transposed weight packing (once, in the wrapper) --------------------
    w1t = jnp.concatenate([wp, wg], axis=1).T.astype(f32)               # [p+g, d_in]
    b1t = jnp.concatenate([bp.reshape(1, -1), bg.reshape(1, -1)],
                          axis=1).T.astype(f32)                         # [p+g, 1]
    wct = wo[:p_dim].T.astype(f32)                                      # [out, p]
    wst = wo[p_dim:2 * p_dim].T.astype(f32)                             # [out, p]
    wgt = wo[2 * p_dim:].T.astype(f32)                                  # [out, g]
    bot = bo.reshape(-1, 1).astype(f32)                                 # [out, 1]
    xt = x.T                                                            # [d_in, N]

    # --- lane (N) tiling ------------------------------------------------------
    if col_tile is None:
        cap = 2048
        if N <= 256:
            col_tile = N          # single full-width lane block (== array dim)
        else:
            # >= 2 lane tiles so both v7x TensorCores get work; 128-aligned.
            half = ((pl.cdiv(N, 2) + 127) // 128) * 128
            col_tile = min(cap, half)
    assert col_tile == N or col_tile % 128 == 0, "col_tile must be 128-aligned or == N"
    grid = (pl.cdiv(N, col_tile),)

    whole = lambda i: (0, 0)  # weights/biases: whole-array blocks, VMEM-resident
    out_t = pl.pallas_call(
        functools.partial(_fan_kernel, p_dim=p_dim),
        out_shape=jax.ShapeDtypeStruct((out_dim, N), x.dtype),
        grid=grid,
        in_specs=[
            pl.BlockSpec((d_in, col_tile), lambda i: (0, i)),
            pl.BlockSpec(w1t.shape, whole),
            pl.BlockSpec(b1t.shape, whole),
            pl.BlockSpec(wct.shape, whole),
            pl.BlockSpec(wst.shape, whole),
            pl.BlockSpec(wgt.shape, whole),
            pl.BlockSpec(bot.shape, whole),
        ],
        out_specs=pl.BlockSpec((out_dim, col_tile), lambda i: (0, i)),
        compiler_params=pltpu.CompilerParams(
            dimension_semantics=("parallel",)),
    )(xt, w1t, b1t, wct, wst, wgt, bot)
    return out_t.T                                                      # [N, out]


if __name__ == "__main__":
    # Model config (matches FANForecastingModel(input_dim=8, output_dim=4)).
    d_in, out_dim = 8, 4
    fan_units, p_ratio = 64, 0.25
    p_dim = int(fan_units * p_ratio)      # 16
    g_dim = fan_units - 2 * p_dim         # 32

    key = jax.random.PRNGKey(0)
    ks = jax.random.split(key, 7)

    def uinit(k, shape, fan_in):
        # deterministic PyTorch-Linear-style U(-1/sqrt(fan_in), 1/sqrt(fan_in))
        bound = 1.0 / math.sqrt(fan_in)
        return jax.random.uniform(k, shape, jnp.float32, -bound, bound)

    wp = uinit(ks[0], (d_in, p_dim), d_in)
    bp = uinit(ks[1], (1, p_dim), d_in)
    wg = uinit(ks[2], (d_in, g_dim), d_in)
    bg = uinit(ks[3], (1, g_dim), d_in)
    wo = uinit(ks[4], (fan_units, out_dim), fan_units)
    bo = uinit(ks[5], (1, out_dim), fan_units)
    params = (wp, bp, wg, bg, wo, bo)

    def ref_forward(xx):
        # pure-JAX reference (exact erf GELU = torch.nn.functional.gelu default)
        p_ref = xx @ wp + bp
        g_ref = jax.nn.gelu(xx @ wg + bg, approximate=False)
        h_ref = jnp.concatenate([jnp.cos(p_ref), jnp.sin(p_ref), g_ref], axis=-1)
        return h_ref @ wo + bo

    # Small demo batch: single lane block, grid == 1.
    N = 16
    x = jax.random.normal(ks[6], (N, d_in), jnp.float32)
    out = jax.block_until_ready(fan_forecast(x, params))
    ref = ref_forward(x)
    assert out.shape == (N, out_dim)
    assert jnp.allclose(out, ref, atol=1e-5, rtol=1e-5), float(jnp.max(jnp.abs(out - ref)))

    # Multi-tile + ragged-tail path: grid > 1, boundary block clipped on store.
    N2 = 300
    x2 = jax.random.normal(jax.random.PRNGKey(1), (N2, d_in), jnp.float32)
    out2 = jax.block_until_ready(fan_forecast(x2, params, col_tile=128))
    ref2 = ref_forward(x2)
    assert out2.shape == (N2, out_dim)
    assert jnp.allclose(out2, ref2, atol=1e-5, rtol=1e-5), float(jnp.max(jnp.abs(out2 - ref2)))

    print("KERNEL_OK")
</pallas_src>

<mosaic_0001>
module attributes {stable_mosaic.version = 11 : i64} {
  func.func @_fan_kernel(%arg0: i32, %arg1: memref<8x16xf32, #tpu.memory_space<vmem>>, %arg2: memref<48x8xf32, #tpu.memory_space<vmem>>, %arg3: memref<48x1xf32, #tpu.memory_space<vmem>>, %arg4: memref<4x16xf32, #tpu.memory_space<vmem>>, %arg5: memref<4x16xf32, #tpu.memory_space<vmem>>, %arg6: memref<4x32xf32, #tpu.memory_space<vmem>>, %arg7: memref<4x1xf32, #tpu.memory_space<vmem>>, %arg8: memref<4x16xf32, #tpu.memory_space<vmem>>) attributes {dimension_semantics = [#tpu.dimension_semantics<parallel>], iteration_bounds = array<i64: 1>, scalar_prefetch = 0 : i64, scratch_operands = 0 : i64, tpu.core_type = #tpu.core_type<tc>, window_params = [{transform_indices = @transform_0, window_bounds = array<i64: 8, 16>}, {pipeline_mode = #tpu.pipeline_mode<synchronous>, transform_indices = @transform_1, window_bounds = array<i64: 48, 8>}, {pipeline_mode = #tpu.pipeline_mode<synchronous>, transform_indices = @transform_2, window_bounds = array<i64: 48, 1>}, {pipeline_mode = #tpu.pipeline_mode<synchronous>, transform_indices = @transform_3, window_bounds = array<i64: 4, 16>}, {pipeline_mode = #tpu.pipeline_mode<synchronous>, transform_indices = @transform_4, window_bounds = array<i64: 4, 16>}, {pipeline_mode = #tpu.pipeline_mode<synchronous>, transform_indices = @transform_5, window_bounds = array<i64: 4, 32>}, {pipeline_mode = #tpu.pipeline_mode<synchronous>, transform_indices = @transform_6, window_bounds = array<i64: 4, 1>}, {transform_indices = @transform_7, window_bounds = array<i64: 4, 16>}]} {
    %c0 = arith.constant 0 : index
    %c0_0 = arith.constant 0 : index
    %0 = vector.load %arg1[%c0, %c0_0] : memref<8x16xf32, #tpu.memory_space<vmem>>, vector<8x16xf32>
    %c0_1 = arith.constant 0 : index
    %c0_2 = arith.constant 0 : index
    %1 = vector.load %arg2[%c0_1, %c0_2] : memref<48x8xf32, #tpu.memory_space<vmem>>, vector<48x8xf32>
    %cst = arith.constant dense<0.000000e+00> : vector<48x16xf32>
    %2 = tpu.matmul %1, %0, %cst {dimension_numbers = #tpu.dot_dimension_numbers<[1], [0], [0], [1], [0, 0, 1, 1], [], []>} : vector<48x8xf32>, vector<8x16xf32>, vector<48x16xf32> -> vector<48x16xf32>
    %c0_3 = arith.constant 0 : index
    %c0_4 = arith.constant 0 : index
    %3 = vector.load %arg3[%c0_3, %c0_4] : memref<48x1xf32, #tpu.memory_space<vmem>>, vector<48x1xf32>
    %4 = vector.broadcast %3 : vector<48x1xf32> to vector<48x16xf32>
    %5 = arith.addf %2, %4 : vector<48x16xf32>
    %6 = vector.extract_strided_slice %5 {offsets = [0, 0], sizes = [16, 16], strides = [1, 1]} : vector<48x16xf32> to vector<16x16xf32>
    %7 = vector.extract_strided_slice %5 {offsets = [16, 0], sizes = [32, 16], strides = [1, 1]} : vector<48x16xf32> to vector<32x16xf32>
    %cst_5 = arith.constant 5.000000e-01 : f32
    %8 = vector.broadcast %cst_5 : f32 to vector<32x16xf32>
    %9 = arith.mulf %8, %7 : vector<32x16xf32>
    %cst_6 = arith.constant 0.707106769 : f32
    %10 = vector.broadcast %cst_6 : f32 to vector<32x16xf32>
    %11 = arith.mulf %7, %10 : vector<32x16xf32>
    %12 = math.absf %11 : vector<32x16xf32>
    %cst_7 = arith.constant 0.327591091 : f32
    %13 = vector.broadcast %cst_7 : f32 to vector<32x16xf32>
    %14 = arith.mulf %13, %12 : vector<32x16xf32>
    %cst_8 = arith.constant 1.000000e+00 : f32
    %15 = vector.broadcast %cst_8 : f32 to vector<32x16xf32>
    %16 = arith.addf %15, %14 : vector<32x16xf32>
    %cst_9 = arith.constant 1.000000e+00 : f32
    %17 = vector.broadcast %cst_9 : f32 to vector<32x16xf32>
    %18 = arith.divf %17, %16 : vector<32x16xf32>
    %cst_10 = arith.constant 1.06140542 : f32
    %19 = vector.broadcast %cst_10 : f32 to vector<32x16xf32>
    %20 = arith.mulf %19, %18 : vector<32x16xf32>
    %cst_11 = arith.constant -1.45315206 : f32
    %21 = vector.broadcast %cst_11 : f32 to vector<32x16xf32>
    %22 = arith.addf %20, %21 : vector<32x16xf32>
    %23 = arith.mulf %22, %18 : vector<32x16xf32>
    %cst_12 = arith.constant 1.42141378 : f32
    %24 = vector.broadcast %cst_12 : f32 to vector<32x16xf32>
    %25 = arith.addf %23, %24 : vector<32x16xf32>
    %26 = arith.mulf %25, %18 : vector<32x16xf32>
    %cst_13 = arith.constant -0.284496725 : f32
    %27 = vector.broadcast %cst_13 : f32 to vector<32x16xf32>
    %28 = arith.addf %26, %27 : vector<32x16xf32>
    %29 = arith.mulf %28, %18 : vector<32x16xf32>
    %cst_14 = arith.constant 0.254829586 : f32
    %30 = vector.broadcast %cst_14 : f32 to vector<32x16xf32>
    %31 = arith.addf %29, %30 : vector<32x16xf32>
    %32 = arith.mulf %31, %18 : vector<32x16xf32>
    %cst_15 = arith.constant 0.000000e+00 : f32
    %33 = vector.broadcast %cst_15 : f32 to vector<32x16xf32>
    %34 = arith.subf %33, %12 : vector<32x16xf32>
    %35 = arith.mulf %34, %12 : vector<32x16xf32>
    %36 = math.exp %35 : vector<32x16xf32>
    %37 = arith.mulf %32, %36 : vector<32x16xf32>
    %cst_16 = arith.constant 1.000000e+00 : f32
    %38 = vector.broadcast %cst_16 : f32 to vector<32x16xf32>
    %39 = arith.subf %38, %37 : vector<32x16xf32>
    %cst_17 = arith.constant 0.000000e+00 : f32
    %40 = vector.broadcast %cst_17 : f32 to vector<32x16xf32>
    %41 = arith.cmpf olt, %11, %40 : vector<32x16xf32>
    %cst_18 = arith.constant 0.000000e+00 : f32
    %42 = vector.broadcast %cst_18 : f32 to vector<32x16xf32>
    %43 = arith.subf %42, %39 : vector<32x16xf32>
    %44 = arith.select %41, %43, %39 : vector<32x16xi1>, vector<32x16xf32>
    %cst_19 = arith.constant 1.000000e+00 : f32
    %45 = vector.broadcast %cst_19 : f32 to vector<32x16xf32>
    %46 = arith.addf %45, %44 : vector<32x16xf32>
    %47 = arith.mulf %9, %46 : vector<32x16xf32>
    %c0_20 = arith.constant 0 : index
    %c0_21 = arith.constant 0 : index
    %48 = vector.load %arg4[%c0_20, %c0_21] : memref<4x16xf32, #tpu.memory_space<vmem>>, vector<4x16xf32>
    %49 = math.cos %6 : vector<16x16xf32>
    %cst_22 = arith.constant dense<0.000000e+00> : vector<4x16xf32>
    %50 = tpu.matmul %48, %49, %cst_22 {dimension_numbers = #tpu.dot_dimension_numbers<[1], [0], [0], [1], [0, 0, 1, 1], [], []>} : vector<4x16xf32>, vector<16x16xf32>, vector<4x16xf32> -> vector<4x16xf32>
    %c0_23 = arith.constant 0 : index
    %c0_24 = arith.constant 0 : index
    %51 = vector.load %arg5[%c0_23, %c0_24] : memref<4x16xf32, #tpu.memory_space<vmem>>, vector<4x16xf32>
    %52 = math.sin %6 : vector<16x16xf32>
    %cst_25 = arith.constant dense<0.000000e+00> : vector<4x16xf32>
    %53 = tpu.matmul %51, %52, %cst_25 {dimension_numbers = #tpu.dot_dimension_numbers<[1], [0], [0], [1], [0, 0, 1, 1], [], []>} : vector<4x16xf32>, vector<16x16xf32>, vector<4x16xf32> -> vector<4x16xf32>
    %54 = arith.addf %50, %53 : vector<4x16xf32>
    %c0_26 = arith.constant 0 : index
    %c0_27 = arith.constant 0 : index
    %55 = vector.load %arg6[%c0_26, %c0_27] : memref<4x32xf32, #tpu.memory_space<vmem>>, vector<4x32xf32>
    %cst_28 = arith.constant dense<0.000000e+00> : vector<4x16xf32>
    %56 = tpu.matmul %55, %47, %cst_28 {dimension_numbers = #tpu.dot_dimension_numbers<[1], [0], [0], [1], [0, 0, 1, 1], [], []>} : vector<4x32xf32>, vector<32x16xf32>, vector<4x16xf32> -> vector<4x16xf32>
    %57 = arith.addf %54, %56 : vector<4x16xf32>
    %c0_29 = arith.constant 0 : index
    %c0_30 = arith.constant 0 : index
    %58 = vector.load %arg7[%c0_29, %c0_30] : memref<4x1xf32, #tpu.memory_space<vmem>>, vector<4x1xf32>
    %59 = vector.broadcast %58 : vector<4x1xf32> to vector<4x16xf32>
    %60 = arith.addf %57, %59 : vector<4x16xf32>
    %c0_31 = arith.constant 0 : index
    %c0_32 = arith.constant 0 : index
    %61 = vector.load %arg8[%c0_31, %c0_32] : memref<4x16xf32, #tpu.memory_space<vmem>>, vector<4x16xf32>
    tpu.vector_store %arg8[%c0_31, %c0_32], %60 {strides = array<i32>} : memref<4x16xf32, #tpu.memory_space<vmem>>, vector<4x16xf32>,
    return
  }
  func.func @transform_0(%arg0: i32) -> (i32, i32) {
    %c0_i32 = arith.constant 0 : i32
    %c0_i32_0 = arith.constant 0 : i32
    return %c0_i32, %arg0 : i32, i32
  }
  func.func @transform_1(%arg0: i32) -> (i32, i32) {
    %c0_i32 = arith.constant 0 : i32
    %c0_i32_0 = arith.constant 0 : i32
    %c0_i32_1 = arith.constant 0 : i32
    return %c0_i32, %c0_i32_0 : i32, i32
  }
  func.func @transform_2(%arg0: i32) -> (i32, i32) {
    %c0_i32 = arith.constant 0 : i32
    %c0_i32_0 = arith.constant 0 : i32
    %c0_i32_1 = arith.constant 0 : i32
    return %c0_i32, %c0_i32_0 : i32, i32
  }
  func.func @transform_3(%arg0: i32) -> (i32, i32) {
    %c0_i32 = arith.constant 0 : i32
    %c0_i32_0 = arith.constant 0 : i32
    %c0_i32_1 = arith.constant 0 : i32
    return %c0_i32, %c0_i32_0 : i32, i32
  }
  func.func @transform_4(%arg0: i32) -> (i32, i32) {
    %c0_i32 = arith.constant 0 : i32
    %c0_i32_0 = arith.constant 0 : i32
    %c0_i32_1 = arith.constant 0 : i32
    return %c0_i32, %c0_i32_0 : i32, i32
  }
  func.func @transform_5(%arg0: i32) -> (i32, i32) {
    %c0_i32 = arith.constant 0 : i32
    %c0_i32_0 = arith.constant 0 : i32
    %c0_i32_1 = arith.constant 0 : i32
    return %c0_i32, %c0_i32_0 : i32, i32
  }
  func.func @transform_6(%arg0: i32) -> (i32, i32) {
    %c0_i32 = arith.constant 0 : i32
    %c0_i32_0 = arith.constant 0 : i32
    %c0_i32_1 = arith.constant 0 : i32
    return %c0_i32, %c0_i32_0 : i32, i32
  }
  func.func @transform_7(%arg0: i32) -> (i32, i32) {
    %c0_i32 = arith.constant 0 : i32
    %c0_i32_0 = arith.constant 0 : i32
    return %c0_i32, %arg0 : i32, i32
  }
}

</mosaic_0001>

<llo_original>
// kernel: tpu_custom_call.1
$region0: #{tpu_custom_call.1}
  #allocation0 [shape = 'u32[]', space=smem, size = 0x4, offset = 0x4, fixed_abs, tag = 'smem constant byte address 0x4 - core index']
  #allocation1 [shape = 'u32[144,128]{1,0:T(1,128)}', space=vmem, size = 0x12000, scoped, tag = 'internal scratch']
  %s0 = inlined_call_operand.vmem [shape: f32[8,16], index: 0, kind: input, shape index: {}]
  %s1 = inlined_call_operand.vmem [shape: f32[48,8], index: 1, kind: input, shape index: {}]
  %s2 = inlined_call_operand.vmem [shape: f32[48,1], index: 2, kind: input, shape index: {}]
  %s3 = inlined_call_operand.vmem [shape: f32[4,16], index: 3, kind: input, shape index: {}]
  %s4 = inlined_call_operand.vmem [shape: f32[4,16], index: 4, kind: input, shape index: {}]
  %s5 = inlined_call_operand.vmem [shape: f32[4,32], index: 5, kind: input, shape index: {}]
  %s6 = inlined_call_operand.vmem [shape: f32[4,1], index: 6, kind: input, shape index: {}]
  %s7 = inlined_call_operand.hbm [shape: f32[4,16], index: 7, kind: output, shape index: {}]
  %s8 = sld [smem:[#allocation0]]
  $region38: #{tpu_custom_call.1} parent=0
    _
  %s10 = ssub.s32 1, %s8
  %s11 = scalar_select 0, %s10, %s8
  $region1: #{tpu_custom_call.1} parent=0
    #allocation2 [shape = 'u8[2048]{0}', space=vmem, size = 0x800, scoped, tag = 'output window, operand 0, single buffered']
    #allocation3 [shape = 's32[1]{0}', space=sflag, size = 0x4, scoped, tag = 'scoped memory for tpu_custom_call.1']
    %12 = vsyncpa [#allocation3], 0
    // Predicated region
    $region2: #{tpu_custom_call.1} parent=1 // pred_check
      _
    $region3: #{tpu_custom_call.1} parent=1 // pred_check_branch
      %14 = sbr.rel (0) target = $region5
    $region4: #{tpu_custom_call.1} parent=1 // pred_region
      _
    $region5: #{tpu_custom_call.1} parent=1 // pred_fallthru
      _
    // Predicated region
    $region6: #{tpu_custom_call.1} parent=1 // pred_check
      _
    $region7: #{tpu_custom_call.1} parent=1 // pred_check_branch
      %16 = sbr.rel (0) target = $region9
    $region8: #{tpu_custom_call.1} parent=1 // pred_region
      _
    $region9: #{tpu_custom_call.1} parent=1 // pred_fallthru
      _
    // Predicated region
    $region10: #{tpu_custom_call.1} parent=1 // pred_check
      _
    $region11: #{tpu_custom_call.1} parent=1 // pred_check_branch
      %18 = sbr.rel (0) target = $region13
    $region12: #{tpu_custom_call.1} parent=1 // pred_region
      _
    $region13: #{tpu_custom_call.1} parent=1 // pred_fallthru
      _
    // Predicated region
    $region14: #{tpu_custom_call.1} parent=1 // pred_check
      _
    $region15: #{tpu_custom_call.1} parent=1 // pred_check_branch
      %20 = sbr.rel (0) target = $region17
    $region16: #{tpu_custom_call.1} parent=1 // pred_region
      _
    $region17: #{tpu_custom_call.1} parent=1 // pred_fallthru
      _
    // Predicated region
    $region18: #{tpu_custom_call.1} parent=1 // pred_check
      _
    $region19: #{tpu_custom_call.1} parent=1 // pred_check_branch
      %22 = sbr.rel (0) target = $region21
    $region20: #{tpu_custom_call.1} parent=1 // pred_region
      _
    $region21: #{tpu_custom_call.1} parent=1 // pred_fallthru
      _
    // Predicated region
    $region22: #{tpu_custom_call.1} parent=1 // pred_check
      _
    $region23: #{tpu_custom_call.1} parent=1 // pred_check_branch
      %24 = sbr.rel (0) target = $region25
    $region24: #{tpu_custom_call.1} parent=1 // pred_region
      _
    $region25: #{tpu_custom_call.1} parent=1 // pred_fallthru
      _
    // Predicated region
    $region26: #{tpu_custom_call.1} parent=1 // pred_check
      _
    $region27: #{tpu_custom_call.1} parent=1 // pred_check_branch
      %26 = sbr.rel (0) target = $region29
    $region28: #{tpu_custom_call.1} parent=1 // pred_region
      _
    $region29: #{tpu_custom_call.1} parent=1 // pred_fallthru
      _
    %v27 = vld [vmem:[%s0] sm:$0xff]
    %v28 = vld [vmem:[%s1] sm:$0xff]
    %v29 = vld [vmem:[%s1 + $0x8] sm:$0xff]
    %v30 = vld [vmem:[%s1 + $0x10] sm:$0xff]
    %v31 = vld [vmem:[%s1 + $0x18] sm:$0xff]
    %v32 = vld [vmem:[%s1 + $0x20] sm:$0xff]
    %v33 = vld [vmem:[%s1 + $0x28] sm:$0xff]
    %v34 = vld [vmem:[%s2] sm:$0xff]
    %v35 = vld [vmem:[%s2 + $0x8] sm:$0xff]
    %v36 = vld [vmem:[%s2 + $0x10] sm:$0xff]
    %v37 = vld [vmem:[%s2 + $0x18] sm:$0xff]
    %v38 = vld [vmem:[%s2 + $0x20] sm:$0xff]
    %v39 = vld [vmem:[%s2 + $0x28] sm:$0xff]
    %41 = vset.pattern.permute.xlu0 0
    %42 = vperm.xlu0 %41, %v34
    %v43 = vpop.permute.xlu0 %42
    %46 = vset.pattern.permute.xlu0 0
    %47 = vperm.xlu0 %46, %v35
    %v48 = vpop.permute.xlu0 %47
    %51 = vset.pattern.permute.xlu0 0
    %52 = vperm.xlu0 %51, %v36
    %v53 = vpop.permute.xlu0 %52
    %56 = vset.pattern.permute.xlu0 0
    %57 = vperm.xlu0 %56, %v37
    %v58 = vpop.permute.xlu0 %57
    %61 = vset.pattern.permute.xlu0 0
    %62 = vperm.xlu0 %61, %v38
    %v63 = vpop.permute.xlu0 %62
    %66 = vset.pattern.permute.xlu0 0
    %67 = vperm.xlu0 %66, %v39
    %v68 = vpop.permute.xlu0 %67
    %vm70 = vcmask 64512
    %v72 = vsel %vm70, %v28, 0
    %v75 = vsel %vm70, %v29, 0
    %v78 = vsel %vm70, %v30, 0
    %v81 = vsel %vm70, %v31, 0
    %v84 = vsel %vm70, %v32, 0
    %v87 = vsel %vm70, %v33, 0
    %89 = vmatprep.subr.mxu0 0.0
    %90 = vmatpush1.msra.mxu0 %v27
    %91 = vmatprep.subr.mxu0 0.0
    %92 = vmatpush1.msra.mxu0 0.0
    %93 = vmatprep.subr.mxu0 0.0
    %94 = vmatpush1.msra.mxu0 0.0
    %95 = vmatprep.subr.mxu0 0.0
    %96 = vmatpush1.msra.mxu0 0.0
    %97 = vmatprep.subr.mxu0 0.0
    %98 = vmatpush1.msra.mxu0 0.0
    %99 = vmatprep.subr.mxu0 0.0
    %100 = vmatpush1.msra.mxu0 0.0
    %101 = vmatprep.subr.mxu0 0.0
    %102 = vmatpush1.msra.mxu0 0.0
    %103 = vmatprep.subr.mxu0 0.0
    %104 = vmatpush1.msra.mxu0 0.0
    %105 = vmatprep.subr.mxu0 0.0
    %106 = vmatpush1.msra.mxu0 0.0
    %107 = vmatprep.subr.mxu0 0.0
    %108 = vmatpush1.msra.mxu0 0.0
    %109 = vmatprep.subr.mxu0 0.0
    %110 = vmatpush1.msra.mxu0 0.0
    %111 = vmatprep.subr.mxu0 0.0
    %112 = vmatpush1.msra.mxu0 0.0
    %113 = vmatprep.subr.mxu0 0.0
    %114 = vmatpush1.msra.mxu0 0.0
    %115 = vmatprep.subr.mxu0 0.0
    %116 = vmatpush1.msra.mxu0 0.0
    %117 = vmatprep.subr.mxu0 0.0
    %118 = vmatpush1.msra.mxu0 0.0
    %119 = vmatprep.subr.mxu0 0.0
    %120 = vmatpush1.msra.mxu0 0.0
    %121 = vmatprep.subr.mxu0 0.0
    %122 = vmatpush1.msra.mxu0 0.0
    %123 = vmatprep.subr.mxu0 0.0
    %124 = vmatpush1.msra.mxu0 0.0
    %125 = vmatprep.subr.mxu0 0.0
    %126 = vmatpush1.msra.mxu0 0.0
    %127 = vmatprep.subr.mxu0 0.0
    %128 = vmatpush1.msra.mxu0 0.0
    %129 = vmatprep.subr.mxu0 0.0
    %130 = vmatpush1.msra.mxu0 0.0
    %131 = vmatprep.subr.mxu0 0.0
    %132 = vmatpush1.msra.mxu0 0.0
    %133 = vmatprep.subr.mxu0 0.0
    %134 = vmatpush1.msra.mxu0 0.0
    %135 = vmatprep.subr.mxu0 0.0
    %136 = vmatpush1.msra.mxu0 0.0
    %137 = vmatprep.subr.mxu0 0.0
    %138 = vmatpush1.msra.mxu0 0.0
    %139 = vmatprep.subr.mxu0 0.0
    %140 = vmatpush1.msra.mxu0 0.0
    %141 = vmatprep.subr.mxu0 0.0
    %142 = vmatpush1.msra.mxu0 0.0
    %143 = vmatprep.subr.mxu0 0.0
    %144 = vmatpush1.msra.mxu0 0.0
    %145 = vmatprep.subr.mxu0 0.0
    %146 = vmatpush1.msra.mxu0 0.0
    %147 = vmatprep.subr.mxu0 0.0
    %148 = vmatpush1.msra.mxu0 0.0
    %149 = vmatprep.subr.mxu0 0.0
    %150 = vmatpush1.msra.mxu0 0.0
    %151 = vmatprep.subr.mxu0 0.0
    %152 = vmatpush1.msra.mxu0 0.0
    %153 = vmatprep.mubr.f32.mxu0 0.0
    %154 = vmatmul.mubr.f32.gmra.mrb[0].mxu0 %v72
    %v155 = vpop.f32.mrb[0].mxu0
    %v156 = vadd.f32 %v43, %v155
    %v157 = vpop.f32.mrb[0].mxu0
    %158 = vmatprep.mubr.f32.mxu0 0.0
    %159 = vmatmul.mubr.f32.gmra.mrb[0].mxu0 %v75
    %v160 = vpop.f32.mrb[0].mxu0
    %v161 = vadd.f32 %v48, %v160
    %v162 = vpop.f32.mrb[0].mxu0
    %163 = vmatprep.mubr.f32.mxu0 0.0
    %164 = vmatmul.mubr.f32.gmra.mrb[0].mxu0 %v78
    %v165 = vpop.f32.mrb[0].mxu0
    %v166 = vadd.f32 %v53, %v165
    %v167 = vpop.f32.mrb[0].mxu0
    %168 = vmatprep.mubr.f32.mxu0 0.0
    %169 = vmatmul.mubr.f32.gmra.mrb[0].mxu0 %v81
    %v170 = vpop.f32.mrb[0].mxu0
    %v171 = vadd.f32 %v58, %v170
    %v172 = vpop.f32.mrb[0].mxu0
    %173 = vmatprep.mubr.f32.mxu0 0.0
    %174 = vmatmul.mubr.f32.gmra.mrb[0].mxu0 %v84
    %v175 = vpop.f32.mrb[0].mxu0
    %v176 = vadd.f32 %v63, %v175
    %v177 = vpop.f32.mrb[0].mxu0
    %178 = vmatprep.mubr.f32.mxu0 0.0
    %179 = vmatmul.mubr.f32.gmra.mrb[0].mxu0 %v87
    %v180 = vpop.f32.mrb[0].mxu0
    %v181 = vadd.f32 %v68, %v180
    %v182 = vpop.f32.mrb[0].mxu0
    %183 = vdwg.mxu0
    %v184 = vmul.f32 %v166, 0.5
    %v185 = vmul.f32 %v171, 0.5
    %v186 = vmul.f32 %v176, 0.5
    %v187 = vmul.f32 %v181, 0.5
    %v188 = vmul.f32 %v166, 0.70710677
    %v189 = vmul.f32 %v171, 0.70710677
    %v190 = vmul.f32 %v176, 0.70710677
    %v191 = vmul.f32 %v181, 0.70710677
    %v192 = vand.u32 2147483647, %v188
    %v193 = vand.u32 2147483647, %v189
    %v194 = vand.u32 2147483647, %v190
    %v195 = vand.u32 2147483647, %v191
    %v196 = vmul.f32 %v192, 0.3275911
    %v197 = vmul.f32 %v193, 0.3275911
    %v198 = vmul.f32 %v194, 0.3275911
    %v199 = vmul.f32 %v195, 0.3275911
    %v200 = vadd.f32 %v196, 1.0
    %v201 = vadd.f32 %v197, 1.0
    %v202 = vadd.f32 %v198, 1.0
    %v203 = vadd.f32 %v199, 1.0
    %v204 = vrcp.pop %v200
    %v205 = vmul.f32 1.0, %v204
    %v206 = vrcp.pop %v201
    %v207 = vmul.f32 1.0, %v206
    %v208 = vrcp.pop %v202
    %v209 = vmul.f32 1.0, %v208
    %v210 = vrcp.pop %v203
    %v211 = vmul.f32 1.0, %v210
    %v212 = vmul.f32 %v205, 1.0614054
    %v213 = vmul.f32 %v207, 1.0614054
    %v214 = vmul.f32 %v209, 1.0614054
    %v215 = vmul.f32 %v211, 1.0614054
    %v216 = vadd.f32 %v212, -1.4531521
    %v217 = vadd.f32 %v213, -1.4531521
    %v218 = vadd.f32 %v214, -1.4531521
    %v219 = vadd.f32 %v215, -1.4531521
    %v220 = vmul.f32 %v216, %v205
    %v221 = vmul.f32 %v217, %v207
    %v222 = vmul.f32 %v218, %v209
    %v223 = vmul.f32 %v219, %v211
    %v224 = vadd.f32 %v220, 1.4214138
    %v225 = vadd.f32 %v221, 1.4214138
    %v226 = vadd.f32 %v222, 1.4214138
    %v227 = vadd.f32 %v223, 1.4214138
    %v228 = vmul.f32 %v224, %v205
    %v229 = vmul.f32 %v225, %v207
    %v230 = vmul.f32 %v226, %v209
    %v231 = vmul.f32 %v227, %v211
    %v232 = vadd.f32 %v228, -0.28449672
    %v233 = vadd.f32 %v229, -0.28449672
    %v234 = vadd.f32 %v230, -0.28449672
    %v235 = vadd.f32 %v231, -0.28449672
    %v236 = vmul.f32 %v232, %v205
    %v237 = vmul.f32 %v233, %v207
    %v238 = vmul.f32 %v234, %v209
    %v239 = vmul.f32 %v235, %v211
    %v240 = vadd.f32 %v236, 0.2548296
    %v241 = vadd.f32 %v237, 0.2548296
    %v242 = vadd.f32 %v238, 0.2548296
    %v243 = vadd.f32 %v239, 0.2548296
    %v244 = vmul.f32 %v240, %v205
    %v245 = vmul.f32 %v241, %v207
    %v246 = vmul.f32 %v242, %v209
    %v247 = vmul.f32 %v243, %v211
    %v248 = vsub.f32 0.0, %v192
    %v249 = vsub.f32 0.0, %v193
    %v250 = vsub.f32 0.0, %v194
    %v251 = vsub.f32 0.0, %v195
    %v252 = vmul.f32 %v248, %v192
    %v253 = vmul.f32 %v249, %v193
    %v254 = vmul.f32 %v250, %v194
    %v255 = vmul.f32 %v251, %v195
    %v256 = vmul.f32 %v252, 1.442695
    %v257 = vpow.pop %v256
    %v258 = vmul.f32 %v253, 1.442695
    %v259 = vpow.pop %v258
    %v260 = vmul.f32 %v254, 1.442695
    %v261 = vpow.pop %v260
    %v262 = vmul.f32 %v255, 1.442695
    %v263 = vpow.pop %v262
    %v264 = vmul.f32 %v244, %v257
    %v265 = vmul.f32 %v245, %v259
    %v266 = vmul.f32 %v246, %v261
    %v267 = vmul.f32 %v247, %v263
    %v268 = vsub.f32 1.0, %v264
    %v269 = vsub.f32 1.0, %v265
    %v270 = vsub.f32 1.0, %v266
    %v271 = vsub.f32 1.0, %v267
    %vm272 = vcmp.lt.f32.partialorder %v188, 0.0
    %vm273 = vcmp.lt.f32.partialorder %v189, 0.0
    %vm274 = vcmp.lt.f32.partialorder %v190, 0.0
    %vm275 = vcmp.lt.f32.partialorder %v191, 0.0
    %v276 = vsub.f32 0.0, %v268
    %v277 = vsub.f32 0.0, %v269
    %v278 = vsub.f32 0.0, %v270
    %v279 = vsub.f32 0.0, %v271
    %v280 = vsel %vm272, %v276, %v268
    %v281 = vsel %vm273, %v277, %v269
    %v282 = vsel %vm274, %v278, %v270
    %v283 = vsel %vm275, %v279, %v271
    %v284 = vadd.f32 %v280, 1.0
    %v285 = vadd.f32 %v281, 1.0
    %v286 = vadd.f32 %v282, 1.0
    %v287 = vadd.f32 %v283, 1.0
    %v288 = vmul.f32 %v184, %v284
    %v289 = vmul.f32 %v185, %v285
    %v290 = vmul.f32 %v186, %v286
    %v291 = vmul.f32 %v187, %v287
    %v292 = vld [vmem:[%s3] sm:$0xf]
    %v293 = vand.u32 2147483647, %v156
    %vm294 = vcmp.le.f32.partialorder %v293, 0.7853982
    %vm295 = vcmp.lt.s32.totalorder %v156, 0
    %v296 = vand.u32 %v156, 2139095040
    %v297 = vshrl.u32 %v296, 23
    %v298 = vsub.s32 %v297, 127
    %v299 = vand.u32 2147483647, %v156
    %v300 = vand.u32 %v299, 8388607
    %v301 = vor.u32 %v300, 8388608
    %v302 = vsub.s32 0, %v301
    %v303 = vadd.s32 %v298, 1
    %vm304 = vcmp.gt.s32.totalorder %v303, 0
    %v305 = vsel %vm304, %v303, 0
    %v306 = vshrl.u32 %v305, 5
    %v307 = vand.u32 %v305, 31
    %v308 = vsub.s32 32, %v307
    %v309 = vshrl.u32 683565275, %v308
    %v310 = vshll.u32 683565275, %v307
    %v311 = vshrl.u32 2475754826, %v308
    %v312 = vor.u32 %v310, %v311
    %v313 = vshll.u32 2475754826, %v307
    %v314 = vshrl.u32 2131351028, %v308
    %v315 = vor.u32 %v313, %v314
    %v316 = vshll.u32 2131351028, %v307
    %v317 = vshrl.u32 2102212464, %v308
    %v318 = vor.u32 %v316, %v317
    %v319 = vshll.u32 2102212464, %v307
    %v320 = vshrl.u32 920167782, %v308
    %v321 = vor.u32 %v319, %v320
    %v322 = vshll.u32 920167782, %v307
    %v323 = vshrl.u32 1326507024, %v308
    %v324 = vor.u32 %v322, %v323
    %vm325 = vcmp.lt.s32.totalorder %v306, 1
    %vm326 = vcmp.lt.s32.totalorder %v306, 2
    %vm327 = vcmp.lt.s32.totalorder %v306, 3
    %vm328 = vcmp.lt.s32.totalorder %v306, 4
    %v329 = vsel %vm325, %v309, %v312
    %v330 = vsel %vm328, %v318, 2102212464
    %v331 = vsel %vm327, %v315, %v330
    %v332 = vsel %vm326, %v329, %v331
    %v333 = vsel %vm325, %v312, %v315
    %v334 = vsel %vm328, %v321, 920167782
    %v335 = vsel %vm327, %v318, %v334
    %v336 = vsel %vm326, %v333, %v335
    %v337 = vsel %vm325, %v315, %v318
    %v338 = vsel %vm328, %v324, 1326507024
    %v339 = vsel %vm327, %v321, %v338
    %v340 = vsel %vm326, %v337, %v339
    %v341 = vshll.u32 %v301, 8
    %v342 = vmul.u32.u64.compose %v341, %v340
    %v343 = vextract.low.u32 %v342
    %v344 = vextract.high.u32 %v342
    %v345 = vmul.u32.u64.compose %v341, %v336
    %v346 = vextract.low.u32 %v345
    %v347 = vextract.high.u32 %v345
    %v348 = vmul.u32 %v341, %v332
    %v349 = vadd.s32 %v344, %v346
    %vm350 = vc.u32 %v344, %v346
    %v351 = vadd.s32 %v347, 1
    %v352 = vsel %vm350, %v351, %v347
    %v353 = vadd.s32 %v348, %v352
    %v354 = vadd.s32 %v353, 536870912
    %v355 = vshrl.u32 %v354, 30
    %v356 = vshll.u32 %v355, 30
    %v357 = vsub.s32 %v353, %v356
    %vm358 = vcmp.lt.s32.totalorder %v357, 0
    %v359 = vsub.s32 0, %v357
    %v360 = vsel %vm358, %v359, %v357
    %v361 = vclz %v360
    %v362 = vsub.s32 %v361, 2
    %vm363 = vcmp.gt.s32.totalorder 0, %v362
    %v364 = vsel %vm363, 0, %v362
    %v365 = vsub.s32 32, %v364
    %v366 = vshll.u32 %v357, %v364
    %v367 = vshrl.u32 %v349, %v365
    %v368 = vor.u32 %v366, %v367
    %v369 = vsub.s32 4294967266, %v364
    %v370 = vadd.s32 %v369, 127
    %v371 = vshll.u32 %v370, 23
    %v372 = vor.u32 4788187, %v371
    %v373 = vand.u32 2147483647, %v372
    %v375 = vcvt.s32.f32 %v368
    %v376 = vmul.f32 %v375, %v373
    %v377 = vxor.u32 %v376, 2147483648
    %v378 = vsel %vm295, %v377, %v376
    %v379 = vsub.s32 4, %v355
    %v380 = vsel %vm295, %v379, %v355
    %v381 = vsel %vm294, %v156, %v378
    %v382 = vsel %vm294, 0, %v380
    %v383 = vcosq.f32.pop %v381
    %v384 = vsinq.f32.pop %v381
    %vm385 = vweird.f32 %v156
    %v386 = vand.u32 %v382, 3
    %vm387 = vcmp.lt.s32.totalorder %v386, 2
    %vm388 = vcmp.eq.s32.totalorder %v386, 0
    %v389 = vxor.u32 %v384, 2147483648
    %v390 = vsel %vm388, %v383, %v389
    %vm391 = vcmp.eq.s32.totalorder %v386, 2
    %v392 = vxor.u32 %v383, 2147483648
    %v393 = vsel %vm391, %v392, %v384
    %v394 = vsel %vm387, %v390, %v393
    %v395 = vsel %vm385, nan, %v394
    %v396 = vand.u32 2147483647, %v161
    %vm397 = vcmp.le.f32.partialorder %v396, 0.7853982
    %vm398 = vcmp.lt.s32.totalorder %v161, 0
    %v399 = vand.u32 %v161, 2139095040
    %v400 = vshrl.u32 %v399, 23
    %v401 = vsub.s32 %v400, 127
    %v402 = vand.u32 2147483647, %v161
    %v403 = vand.u32 %v402, 8388607
    %v404 = vor.u32 %v403, 8388608
    %v405 = vsub.s32 0, %v404
    %v406 = vadd.s32 %v401, 1
    %vm407 = vcmp.gt.s32.totalorder %v406, 0
    %v408 = vsel %vm407, %v406, 0
    %v409 = vshrl.u32 %v408, 5
    %v410 = vand.u32 %v408, 31
    %v411 = vsub.s32 32, %v410
    %v412 = vshrl.u32 683565275, %v411
    %v413 = vshll.u32 683565275, %v410
    %v414 = vshrl.u32 2475754826, %v411
    %v415 = vor.u32 %v413, %v414
    %v416 = vshll.u32 2475754826, %v410
    %v417 = vshrl.u32 2131351028, %v411
    %v418 = vor.u32 %v416, %v417
    %v419 = vshll.u32 2131351028, %v410
    %v420 = vshrl.u32 2102212464, %v411
    %v421 = vor.u32 %v419, %v420
    %v422 = vshll.u32 2102212464, %v410
    %v423 = vshrl.u32 920167782, %v411
    %v424 = vor.u32 %v422, %v423
    %v425 = vshll.u32 920167782, %v410
    %v426 = vshrl.u32 1326507024, %v411
    %v427 = vor.u32 %v425, %v426
    %vm428 = vcmp.lt.s32.totalorder %v409, 1
    %vm429 = vcmp.lt.s32.totalorder %v409, 2
    %vm430 = vcmp.lt.s32.totalorder %v409, 3
    %vm431 = vcmp.lt.s32.totalorder %v409, 4
    %v432 = vsel %vm428, %v412, %v415
    %v433 = vsel %vm431, %v421, 2102212464
    %v434 = vsel %vm430, %v418, %v433
    %v435 = vsel %vm429, %v432, %v434
    %v436 = vsel %vm428, %v415, %v418
    %v437 = vsel %vm431, %v424, 920167782
    %v438 = vsel %vm430, %v421, %v437
    %v439 = vsel %vm429, %v436, %v438
    %v440 = vsel %vm428, %v418, %v421
    %v441 = vsel %vm431, %v427, 1326507024
    %v442 = vsel %vm430, %v424, %v441
    %v443 = vsel %vm429, %v440, %v442
    %v444 = vshll.u32 %v404, 8
    %v445 = vmul.u32.u64.compose %v444, %v443
    %v446 = vextract.low.u32 %v445
    %v447 = vextract.high.u32 %v445
    %v448 = vmul.u32.u64.compose %v444, %v439
    %v449 = vextract.low.u32 %v448
    %v450 = vextract.high.u32 %v448
    %v451 = vmul.u32 %v444, %v435
    %v452 = vadd.s32 %v447, %v449
    %vm453 = vc.u32 %v447, %v449
    %v454 = vadd.s32 %v450, 1
    %v455 = vsel %vm453, %v454, %v450
    %v456 = vadd.s32 %v451, %v455
    %v457 = vadd.s32 %v456, 536870912
    %v458 = vshrl.u32 %v457, 30
    %v459 = vshll.u32 %v458, 30
    %v460 = vsub.s32 %v456, %v459
    %vm461 = vcmp.lt.s32.totalorder %v460, 0
    %v462 = vsub.s32 0, %v460
    %v463 = vsel %vm461, %v462, %v460
    %v464 = vclz %v463
    %v465 = vsub.s32 %v464, 2
    %vm466 = vcmp.gt.s32.totalorder 0, %v465
    %v467 = vsel %vm466, 0, %v465
    %v468 = vsub.s32 32, %v467
    %v469 = vshll.u32 %v460, %v467
    %v470 = vshrl.u32 %v452, %v468
    %v471 = vor.u32 %v469, %v470
    %v472 = vsub.s32 4294967266, %v467
    %v473 = vadd.s32 %v472, 127
    %v474 = vshll.u32 %v473, 23
    %v475 = vor.u32 4788187, %v474
    %v476 = vand.u32 2147483647, %v475
    %v478 = vcvt.s32.f32 %v471
    %v479 = vmul.f32 %v478, %v476
    %v480 = vxor.u32 %v479, 2147483648
    %v481 = vsel %vm398, %v480, %v479
    %v482 = vsub.s32 4, %v458
    %v483 = vsel %vm398, %v482, %v458
    %v484 = vsel %vm397, %v161, %v481
    %v485 = vsel %vm397, 0, %v483
    %v486 = vcosq.f32.pop %v484
    %v487 = vsinq.f32.pop %v484
    %vm488 = vweird.f32 %v161
    %v489 = vand.u32 %v485, 3
    %vm490 = vcmp.lt.s32.totalorder %v489, 2
    %vm491 = vcmp.eq.s32.totalorder %v489, 0
    %v492 = vxor.u32 %v487, 2147483648
    %v493 = vsel %vm491, %v486, %v492
    %vm494 = vcmp.eq.s32.totalorder %v489, 2
    %v495 = vxor.u32 %v486, 2147483648
    %v496 = vsel %vm494, %v495, %v487
    %v497 = vsel %vm490, %v493, %v496
    %v498 = vsel %vm488, nan, %v497
    %v499 = vld [vmem:[%s4] sm:$0xf]
    %v500 = vand.u32 2147483647, %v156
    %vm501 = vcmp.le.f32.partialorder %v500, 0.7853982
    %vm502 = vcmp.lt.s32.totalorder %v156, 0
    %v503 = vand.u32 %v156, 2139095040
    %v504 = vshrl.u32 %v503, 23
    %v505 = vsub.s32 %v504, 127
    %v506 = vand.u32 2147483647, %v156
    %v507 = vand.u32 %v506, 8388607
    %v508 = vor.u32 %v507, 8388608
    %v509 = vsub.s32 0, %v508
    %v510 = vadd.s32 %v505, 1
    %vm511 = vcmp.gt.s32.totalorder %v510, 0
    %v512 = vsel %vm511, %v510, 0
    %v513 = vshrl.u32 %v512, 5
    %v514 = vand.u32 %v512, 31
    %v515 = vsub.s32 32, %v514
    %v516 = vshrl.u32 683565275, %v515
    %v517 = vshll.u32 683565275, %v514
    %v518 = vshrl.u32 2475754826, %v515
    %v519 = vor.u32 %v517, %v518
    %v520 = vshll.u32 2475754826, %v514
    %v521 = vshrl.u32 2131351028, %v515
    %v522 = vor.u32 %v520, %v521
    %v523 = vshll.u32 2131351028, %v514
    %v524 = vshrl.u32 2102212464, %v515
    %v525 = vor.u32 %v523, %v524
    %v526 = vshll.u32 2102212464, %v514
    %v527 = vshrl.u32 920167782, %v515
    %v528 = vor.u32 %v526, %v527
    %v529 = vshll.u32 920167782, %v514
    %v530 = vshrl.u32 1326507024, %v515
    %v531 = vor.u32 %v529, %v530
    %vm532 = vcmp.lt.s32.totalorder %v513, 1
    %vm533 = vcmp.lt.s32.totalorder %v513, 2
    %vm534 = vcmp.lt.s32.totalorder %v513, 3
    %vm535 = vcmp.lt.s32.totalorder %v513, 4
    %v536 = vsel %vm532, %v516, %v519
    %v537 = vsel %vm535, %v525, 2102212464
    %v538 = vsel %vm534, %v522, %v537
    %v539 = vsel %vm533, %v536, %v538
    %v540 = vsel %vm532, %v519, %v522
    %v541 = vsel %vm535, %v528, 920167782
    %v542 = vsel %vm534, %v525, %v541
    %v543 = vsel %vm533, %v540, %v542
    %v544 = vsel %vm532, %v522, %v525
    %v545 = vsel %vm535, %v531, 1326507024
    %v546 = vsel %vm534, %v528, %v545
    %v547 = vsel %vm533, %v544, %v546
    %v548 = vshll.u32 %v508, 8
    %v549 = vmul.u32.u64.compose %v548, %v547
    %v550 = vextract.low.u32 %v549
    %v551 = vextract.high.u32 %v549
    %v552 = vmul.u32.u64.compose %v548, %v543
    %v553 = vextract.low.u32 %v552
    %v554 = vextract.high.u32 %v552
    %v555 = vmul.u32 %v548, %v539
    %v556 = vadd.s32 %v551, %v553
    %vm557 = vc.u32 %v551, %v553
    %v558 = vadd.s32 %v554, 1
    %v559 = vsel %vm557, %v558, %v554
    %v560 = vadd.s32 %v555, %v559
    %v561 = vadd.s32 %v560, 536870912
    %v562 = vshrl.u32 %v561, 30
    %v563 = vshll.u32 %v562, 30
    %v564 = vsub.s32 %v560, %v563
    %vm565 = vcmp.lt.s32.totalorder %v564, 0
    %v566 = vsub.s32 0, %v564
    %v567 = vsel %vm565, %v566, %v564
    %v568 = vclz %v567
    %v569 = vsub.s32 %v568, 2
    %vm570 = vcmp.gt.s32.totalorder 0, %v569
    %v571 = vsel %vm570, 0, %v569
    %v572 = vsub.s32 32, %v571
    %v573 = vshll.u32 %v564, %v571
    %v574 = vshrl.u32 %v556, %v572
    %v575 = vor.u32 %v573, %v574
    %v576 = vsub.s32 4294967266, %v571
    %v577 = vadd.s32 %v576, 127
    %v578 = vshll.u32 %v577, 23
    %v579 = vor.u32 4788187, %v578
    %v580 = vand.u32 2147483647, %v579
    %v582 = vcvt.s32.f32 %v575
    %v583 = vmul.f32 %v582, %v580
    %v584 = vxor.u32 %v583, 2147483648
    %v585 = vsel %vm502, %v584, %v583
    %v586 = vsub.s32 4, %v562
    %v587 = vsel %vm502, %v586, %v562
    %v588 = vsel %vm501, %v156, %v585
    %v589 = vsel %vm501, 0, %v587
    %v590 = vcosq.f32.pop %v588
    %v591 = vsinq.f32.pop %v588
    %vm592 = vweird.f32 %v156
    %v593 = vadd.s32 %v589, 3
    %v594 = vand.u32 %v593, 3
    %vm595 = vcmp.lt.s32.totalorder %v594, 2
    %vm596 = vcmp.eq.s32.totalorder %v594, 0
    %v597 = vxor.u32 %v591, 2147483648
    %v598 = vsel %vm596, %v590, %v597
    %vm599 = vcmp.eq.s32.totalorder %v594, 2
    %v600 = vxor.u32 %v590, 2147483648
    %v601 = vsel %vm599, %v600, %v591
    %v602 = vsel %vm595, %v598, %v601
    %v603 = vsel %vm592, nan, %v602
    %v604 = vand.u32 2147483647, %v161
    %vm605 = vcmp.le.f32.partialorder %v604, 0.7853982
    %vm606 = vcmp.lt.s32.totalorder %v161, 0
    %v607 = vand.u32 %v161, 2139095040
    %v608 = vshrl.u32 %v607, 23
    %v609 = vsub.s32 %v608, 127
    %v610 = vand.u32 2147483647, %v161
    %v611 = vand.u32 %v610, 8388607
    %v612 = vor.u32 %v611, 8388608
    %v613 = vsub.s32 0, %v612
    %v614 = vadd.s32 %v609, 1
    %vm615 = vcmp.gt.s32.totalorder %v614, 0
    %v616 = vsel %vm615, %v614, 0
    %v617 = vshrl.u32 %v616, 5
    %v618 = vand.u32 %v616, 31
    %v619 = vsub.s32 32, %v618
    %v620 = vshrl.u32 683565275, %v619
    %v621 = vshll.u32 683565275, %v618
    %v622 = vshrl.u32 2475754826, %v619
    %v623 = vor.u32 %v621, %v622
    %v624 = vshll.u32 2475754826, %v618
    %v625 = vshrl.u32 2131351028, %v619
    %v626 = vor.u32 %v624, %v625
    %v627 = vshll.u32 2131351028, %v618
    %v628 = vshrl.u32 2102212464, %v619
    %v629 = vor.u32 %v627, %v628
    %v630 = vshll.u32 2102212464, %v618
    %v631 = vshrl.u32 920167782, %v619
    %v632 = vor.u32 %v630, %v631
    %v633 = vshll.u32 920167782, %v618
    %v634 = vshrl.u32 1326507024, %v619
    %v635 = vor.u32 %v633, %v634
    %vm636 = vcmp.lt.s32.totalorder %v617, 1
    %vm637 = vcmp.lt.s32.totalorder %v617, 2
    %vm638 = vcmp.lt.s32.totalorder %v617, 3
    %vm639 = vcmp.lt.s32.totalorder %v617, 4
    %v640 = vsel %vm636, %v620, %v623
    %v641 = vsel %vm639, %v629, 2102212464
    %v642 = vsel %vm638, %v626, %v641
    %v643 = vsel %vm637, %v640, %v642
    %v644 = vsel %vm636, %v623, %v626
    %v645 = vsel %vm639, %v632, 920167782
    %v646 = vsel %vm638, %v629, %v645
    %v647 = vsel %vm637, %v644, %v646
    %v648 = vsel %vm636, %v626, %v629
    %v649 = vsel %vm639, %v635, 1326507024
    %v650 = vsel %vm638, %v632, %v649
    %v651 = vsel %vm637, %v648, %v650
    %v652 = vshll.u32 %v612, 8
    %v653 = vmul.u32.u64.compose %v652, %v651
    %v654 = vextract.low.u32 %v653
    %v655 = vextract.high.u32 %v653
    %v656 = vmul.u32.u64.compose %v652, %v647
    %v657 = vextract.low.u32 %v656
    %v658 = vextract.high.u32 %v656
    %v659 = vmul.u32 %v652, %v643
    %v660 = vadd.s32 %v655, %v657
    %vm661 = vc.u32 %v655, %v657
    %v662 = vadd.s32 %v658, 1
    %v663 = vsel %vm661, %v662, %v658
    %v664 = vadd.s32 %v659, %v663
    %v665 = vadd.s32 %v664, 536870912
    %v666 = vshrl.u32 %v665, 30
    %v667 = vshll.u32 %v666, 30
    %v668 = vsub.s32 %v664, %v667
    %vm669 = vcmp.lt.s32.totalorder %v668, 0
    %v670 = vsub.s32 0, %v668
    %v671 = vsel %vm669, %v670, %v668
    %v672 = vclz %v671
    %v673 = vsub.s32 %v672, 2
    %vm674 = vcmp.gt.s32.totalorder 0, %v673
    %v675 = vsel %vm674, 0, %v673
    %v676 = vsub.s32 32, %v675
    %v677 = vshll.u32 %v668, %v675
    %v678 = vshrl.u32 %v660, %v676
    %v679 = vor.u32 %v677, %v678
    %v680 = vsub.s32 4294967266, %v675
    %v681 = vadd.s32 %v680, 127
    %v682 = vshll.u32 %v681, 23
    %v683 = vor.u32 4788187, %v682
    %v684 = vand.u32 2147483647, %v683
    %v686 = vcvt.s32.f32 %v679
    %v687 = vmul.f32 %v686, %v684
    %v688 = vxor.u32 %v687, 2147483648
    %v689 = vsel %vm606, %v688, %v687
    %v690 = vsub.s32 4, %v666
    %v691 = vsel %vm606, %v690, %v666
    %v692 = vsel %vm605, %v161, %v689
    %v693 = vsel %vm605, 0, %v691
    %v694 = vcosq.f32.pop %v692
    %v695 = vsinq.f32.pop %v692
    %vm696 = vweird.f32 %v161
    %v697 = vadd.s32 %v693, 3
    %v698 = vand.u32 %v697, 3
    %vm699 = vcmp.lt.s32.totalorder %v698, 2
    %vm700 = vcmp.eq.s32.totalorder %v698, 0
    %v701 = vxor.u32 %v695, 2147483648
    %v702 = vsel %vm700, %v694, %v701
    %vm703 = vcmp.eq.s32.totalorder %v698, 2
    %v704 = vxor.u32 %v694, 2147483648
    %v705 = vsel %vm703, %v704, %v695
    %v706 = vsel %vm699, %v702, %v705
    %v707 = vsel %vm696, nan, %v706
    %vm708 = vcmask 130048
    %v710 = vsel %vm708, %v499, 0
    %712 = vmatprep.subr.mxu0 0.0
    %713 = vmatpush1.msra.mxu0 %v603
    %714 = vmatprep.subr.mxu0 0.0
    %715 = vmatpush1.msra.mxu0 %v707
    %716 = vmatprep.subr.mxu0 0.0
    %717 = vmatpush1.msra.mxu0 0.0
    %718 = vmatprep.subr.mxu0 0.0
    %719 = vmatpush1.msra.mxu0 0.0
    %720 = vmatprep.subr.mxu0 0.0
    %721 = vmatpush1.msra.mxu0 0.0
    %722 = vmatprep.subr.mxu0 0.0
    %723 = vmatpush1.msra.mxu0 0.0
    %724 = vmatprep.subr.mxu0 0.0
    %725 = vmatpush1.msra.mxu0 0.0
    %726 = vmatprep.subr.mxu0 0.0
    %727 = vmatpush1.msra.mxu0 0.0
    %728 = vmatprep.subr.mxu0 0.0
    %729 = vmatpush1.msra.mxu0 0.0
    %730 = vmatprep.subr.mxu0 0.0
    %731 = vmatpush1.msra.mxu0 0.0
    %732 = vmatprep.subr.mxu0 0.0
    %733 = vmatpush1.msra.mxu0 0.0
    %734 = vmatprep.subr.mxu0 0.0
    %735 = vmatpush1.msra.mxu0 0.0
    %736 = vmatprep.subr.mxu0 0.0
    %737 = vmatpush1.msra.mxu0 0.0
    %738 = vmatprep.subr.mxu0 0.0
    %739 = vmatpush1.msra.mxu0 0.0
    %740 = vmatprep.subr.mxu0 0.0
    %741 = vmatpush1.msra.mxu0 0.0
    %742 = vmatprep.subr.mxu0 0.0
    %743 = vmatpush1.msra.mxu0 0.0
    %744 = vmatprep.subr.mxu0 0.0
    %745 = vmatpush1.msra.mxu0 0.0
    %746 = vmatprep.subr.mxu0 0.0
    %747 = vmatpush1.msra.mxu0 0.0
    %748 = vmatprep.subr.mxu0 0.0
    %749 = vmatpush1.msra.mxu0 0.0
    %750 = vmatprep.subr.mxu0 0.0
    %751 = vmatpush1.msra.mxu0 0.0
    %752 = vmatprep.subr.mxu0 0.0
    %753 = vmatpush1.msra.mxu0 0.0
    %754 = vmatprep.subr.mxu0 0.0
    %755 = vmatpush1.msra.mxu0 0.0
    %756 = vmatprep.subr.mxu0 0.0
    %757 = vmatpush1.msra.mxu0 0.0
    %758 = vmatprep.subr.mxu0 0.0
    %759 = vmatpush1.msra.mxu0 0.0
    %760 = vmatprep.subr.mxu0 0.0
    %761 = vmatpush1.msra.mxu0 0.0
    %762 = vmatprep.subr.mxu0 0.0
    %763 = vmatpush1.msra.mxu0 0.0
    %764 = vmatprep.subr.mxu0 0.0
    %765 = vmatpush1.msra.mxu0 0.0
    %766 = vmatprep.subr.mxu0 0.0
    %767 = vmatpush1.msra.mxu0 0.0
    %768 = vmatprep.subr.mxu0 0.0
    %769 = vmatpush1.msra.mxu0 0.0
    %770 = vmatprep.subr.mxu0 0.0
    %771 = vmatpush1.msra.mxu0 0.0
    %772 = vmatprep.subr.mxu0 0.0
    %773 = vmatpush1.msra.mxu0 0.0
    %774 = vmatprep.subr.mxu0 0.0
    %775 = vmatpush1.msra.mxu0 0.0
    %776 = vmatprep.mubr.f32.mxu0 0.0
    %777 = vmatmul.mubr.f32.gmra.mrb[0].mxu0 %v710
    %v778 = vpop.f32.mrb[0].mxu0
    %v779 = vadd.f32 0.0, %v778
    %v780 = vpop.f32.mrb[0].mxu0
    %781 = vdwg.mxu0
    %v783 = vsel %vm708, %v292, 0
    %785 = vmatprep.subr.mxu0 0.0
    %786 = vmatpush1.msra.mxu0 %v395
    %787 = vmatprep.subr.mxu0 0.0
    %788 = vmatpush1.msra.mxu0 %v498
    %789 = vmatprep.subr.mxu0 0.0
    %790 = vmatpush1.msra.mxu0 0.0
    %791 = vmatprep.subr.mxu0 0.0
    %792 = vmatpush1.msra.mxu0 0.0
    %793 = vmatprep.subr.mxu0 0.0
    %794 = vmatpush1.msra.mxu0 0.0
    %795 = vmatprep.subr.mxu0 0.0
    %796 = vmatpush1.msra.mxu0 0.0
    %797 = vmatprep.subr.mxu0 0.0
    %798 = vmatpush1.msra.mxu0 0.0
    %799 = vmatprep.subr.mxu0 0.0
    %800 = vmatpush1.msra.mxu0 0.0
    %801 = vmatprep.subr.mxu0 0.0
    %802 = vmatpush1.msra.mxu0 0.0
    %803 = vmatprep.subr.mxu0 0.0
    %804 = vmatpush1.msra.mxu0 0.0
    %805 = vmatprep.subr.mxu0 0.0
    %806 = vmatpush1.msra.mxu0 0.0
    %807 = vmatprep.subr.mxu0 0.0
    %808 = vmatpush1.msra.mxu0 0.0
    %809 = vmatprep.subr.mxu0 0.0
    %810 = vmatpush1.msra.mxu0 0.0
    %811 = vmatprep.subr.mxu0 0.0
    %812 = vmatpush1.msra.mxu0 0.0
    %813 = vmatprep.subr.mxu0 0.0
    %814 = vmatpush1.msra.mxu0 0.0
    %815 = vmatprep.subr.mxu0 0.0
    %816 = vmatpush1.msra.mxu0 0.0
    %817 = vmatprep.subr.mxu0 0.0
    %818 = vmatpush1.msra.mxu0 0.0
    %819 = vmatprep.subr.mxu0 0.0
    %820 = vmatpush1.msra.mxu0 0.0
    %821 = vmatprep.subr.mxu0 0.0
    %822 = vmatpush1.msra.mxu0 0.0
    %823 = vmatprep.subr.mxu0 0.0
    %824 = vmatpush1.msra.mxu0 0.0
    %825 = vmatprep.subr.mxu0 0.0
    %826 = vmatpush1.msra.mxu0 0.0
    %827 = vmatprep.subr.mxu0 0.0
    %828 = vmatpush1.msra.mxu0 0.0
    %829 = vmatprep.subr.mxu0 0.0
    %830 = vmatpush1.msra.mxu0 0.0
    %831 = vmatprep.subr.mxu0 0.0
    %832 = vmatpush1.msra.mxu0 0.0
    %833 = vmatprep.subr.mxu0 0.0
    %834 = vmatpush1.msra.mxu0 0.0
    %835 = vmatprep.subr.mxu0 0.0
    %836 = vmatpush1.msra.mxu0 0.0
    %837 = vmatprep.subr.mxu0 0.0
    %838 = vmatpush1.msra.mxu0 0.0
    %839 = vmatprep.subr.mxu0 0.0
    %840 = vmatpush1.msra.mxu0 0.0
    %841 = vmatprep.subr.mxu0 0.0
    %842 = vmatpush1.msra.mxu0 0.0
    %843 = vmatprep.subr.mxu0 0.0
    %844 = vmatpush1.msra.mxu0 0.0
    %845 = vmatprep.subr.mxu0 0.0
    %846 = vmatpush1.msra.mxu0 0.0
    %847 = vmatprep.subr.mxu0 0.0
    %848 = vmatpush1.msra.mxu0 0.0
    %849 = vmatprep.mubr.f32.mxu0 0.0
    %850 = vmatmul.mubr.f32.gmra.mrb[0].mxu0 %v783
    %v851 = vpop.f32.mrb[0].mxu0
    %v852 = vadd.f32 %v779, %v851
    %v853 = vpop.f32.mrb[0].mxu0
    %854 = vdwg.mxu0
    %v855 = vld [vmem:[%s5] sm:$0xf]
    %vm856 = vcmask 261120
    %v858 = vsel %vm856, %v855, 0
    %860 = vmatprep.subr.mxu0 0.0
    %861 = vmatpush1.msra.mxu0 %v288
    %862 = vmatprep.subr.mxu0 0.0
    %863 = vmatpush1.msra.mxu0 %v289
    %864 = vmatprep.subr.mxu0 0.0
    %865 = vmatpush1.msra.mxu0 %v290
    %866 = vmatprep.subr.mxu0 0.0
    %867 = vmatpush1.msra.mxu0 %v291
    %868 = vmatprep.subr.mxu0 0.0
    %869 = vmatpush1.msra.mxu0 0.0
    %870 = vmatprep.subr.mxu0 0.0
    %871 = vmatpush1.msra.mxu0 0.0
    %872 = vmatprep.subr.mxu0 0.0
    %873 = vmatpush1.msra.mxu0 0.0
    %874 = vmatprep.subr.mxu0 0.0
    %875 = vmatpush1.msra.mxu0 0.0
    %876 = vmatprep.subr.mxu0 0.0
    %877 = vmatpush1.msra.mxu0 0.0
    %878 = vmatprep.subr.mxu0 0.0
    %879 = vmatpush1.msra.mxu0 0.0
    %880 = vmatprep.subr.mxu0 0.0
    %881 = vmatpush1.msra.mxu0 0.0
    %882 = vmatprep.subr.mxu0 0.0
    %883 = vmatpush1.msra.mxu0 0.0
    %884 = vmatprep.subr.mxu0 0.0
    %885 = vmatpush1.msra.mxu0 0.0
    %886 = vmatprep.subr.mxu0 0.0
    %887 = vmatpush1.msra.mxu0 0.0
    %888 = vmatprep.subr.mxu0 0.0
    %889 = vmatpush1.msra.mxu0 0.0
    %890 = vmatprep.subr.mxu0 0.0
    %891 = vmatpush1.msra.mxu0 0.0
    %892 = vmatprep.subr.mxu0 0.0
    %893 = vmatpush1.msra.mxu0 0.0
    %894 = vmatprep.subr.mxu0 0.0
    %895 = vmatpush1.msra.mxu0 0.0
    %896 = vmatprep.subr.mxu0 0.0
    %897 = vmatpush1.msra.mxu0 0.0
    %898 = vmatprep.subr.mxu0 0.0
    %899 = vmatpush1.msra.mxu0 0.0
    %900 = vmatprep.subr.mxu0 0.0
    %901 = vmatpush1.msra.mxu0 0.0
    %902 = vmatprep.subr.mxu0 0.0
    %903 = vmatpush1.msra.mxu0 0.0
    %904 = vmatprep.subr.mxu0 0.0
    %905 = vmatpush1.msra.mxu0 0.0
    %906 = vmatprep.subr.mxu0 0.0
    %907 = vmatpush1.msra.mxu0 0.0
    %908 = vmatprep.subr.mxu0 0.0
    %909 = vmatpush1.msra.mxu0 0.0
    %910 = vmatprep.subr.mxu0 0.0
    %911 = vmatpush1.msra.mxu0 0.0
    %912 = vmatprep.subr.mxu0 0.0
    %913 = vmatpush1.msra.mxu0 0.0
    %914 = vmatprep.subr.mxu0 0.0
    %915 = vmatpush1.msra.mxu0 0.0
    %916 = vmatprep.subr.mxu0 0.0
    %917 = vmatpush1.msra.mxu0 0.0
    %918 = vmatprep.subr.mxu0 0.0
    %919 = vmatpush1.msra.mxu0 0.0
    %920 = vmatprep.subr.mxu0 0.0
    %921 = vmatpush1.msra.mxu0 0.0
    %922 = vmatprep.subr.mxu0 0.0
    %923 = vmatpush1.msra.mxu0 0.0
    %924 = vmatprep.mubr.f32.mxu0 0.0
    %925 = vmatmul.mubr.f32.gmra.mrb[0].mxu0 %v858
    %v926 = vpop.f32.mrb[0].mxu0
    %v927 = vadd.f32 0.0, %v926
    %v928 = vpop.f32.mrb[0].mxu0
    %929 = vdwg.mxu0
    %v930 = vadd.f32 %v852, %v927
    %v931 = vld [vmem:[%s6] sm:$0xf]
    %933 = vset.pattern.permute.xlu0 0
    %934 = vperm.xlu0 %933, %v931
    %v935 = vpop.permute.xlu0 %934
    %v937 = vadd.f32 %v930, %v935
    %vm938 = vcmask 125952
    %939 = vst.msk [vmem:[#allocation2] sm:$0xf] %vm938, %v937
    // Predicated region
    $region30: #{tpu_custom_call.1} parent=1 // pred_check
      _
    $region31: #{tpu_custom_call.1} parent=1 // pred_check_branch
      %941 = sbr.rel (0) target = $region33
    $region32: #{tpu_custom_call.1} parent=1 // pred_region
      %s943 = ssub.s32 64, 64
      %944 = vsyncadd [#allocation3], %s943
      %s946 = sshll.u32 [#allocation2], 4
      %s947 = int_to_ptr.vmem [resolvable:$true] %s946
      %949 = dma.vmem_to_hbm [thread:$0]  %s947, 64, %s7, [#allocation3]
    $region33: #{tpu_custom_call.1} parent=1 // pred_fallthru
      _
    // Predicated region
    $region34: #{tpu_custom_call.1} parent=1 // pred_check
      _
    $region35: #{tpu_custom_call.1} parent=1 // pred_check_branch
      %951 = sbr.rel (0) target = $region37
    $region36: #{tpu_custom_call.1} parent=1 // pred_region
      %952 = dma.done [#allocation3], 64
    $region37: #{tpu_custom_call.1} parent=1 // pred_fallthru
      _
    %953 = vsyncpa [#allocation3], 1

</llo_original>
